<compile_context>
chip_gen: v7x
topology: tpu7x:2x2x1
jax: 0.10.0
libtpu: 0.0.40
codegen_flags: <defaults>
</compile_context>

<pallas_src>
import numpy as np
import jax
import jax.numpy as jnp
from jax.experimental import pallas as pl
from jax.experimental.pallas import tpu as pltpu  # noqa: F401  (TPU-specific tuning hooks)


def _make_unmask_kernel(gather_idx, B, seq, E):
    """Kernel with the static row permutation baked in.

    gather_idx[p] = row of the concatenated source that output row p takes
                    (x rows, then the mask-embedding row, then an optional
                    all-zero row for never-written positions).
    """

    def kernel(src_ref, out_ref):
        src = src_ref[...]                                          # (B, S_src, E)
        row = jax.lax.broadcasted_iota(jnp.int32, (B, seq, E), 1)   # output row ids

        # Build the whole tile in registers, then one dense store.
        g0 = gather_idx[0]
        out = jnp.broadcast_to(src[:, g0:g0 + 1, :], (B, seq, E))
        for p in range(1, seq):                                     # static unroll
            g = gather_idx[p]
            out = jnp.where(
                row == p,
                jnp.broadcast_to(src[:, g:g + 1, :], (B, seq, E)),
                out,
            )
        out_ref[...] = out                       # single lane-dense (B, seq, E) store

    return kernel


def unmask_embeeding_chan(x, w, bias, sample_index, mask_index, num_patches,
                          fill_value=127.0 / 255.0):
    """x: (B, 1 + len(sample_index), E).  Returns (B, 1 + num_patches, E) f32.

    w: (input_size*input_size, E), bias: (E,) — the nn.Linear parameters.
    raw_inputs is the module's constant 127/255 fill, so its projection is
    constant-folded to fill * w.sum(0) + bias (batch-independent).
    """
    B, S_x, E = x.shape
    seq = 1 + num_patches

    pos = [0] + list(sample_index)
    assert S_x == len(pos), "x must have 1 + len(sample_index) rows"

    # --- constant-folded projection (exact f32 column sum, no matmul dispatch) ---
    mask_vec = (fill_value * jnp.sum(w.astype(jnp.float32), axis=0)
                + bias.astype(jnp.float32))                          # (E,)

    # --- static last-write-wins scatter bookkeeping (trace-time Python) ---
    src_of = {}
    for j, p in enumerate(pos):
        src_of[p] = j                      # later duplicates win (PyTorch semantics)
    MASK_ROW = S_x                         # mask vector appended as row S_x of src
    for p in mask_index:
        src_of[p] = MASK_ROW               # mask assignment overrides x

    needs_zero = any(p not in src_of for p in range(seq))
    ZERO_ROW = S_x + 1                     # only materialized if actually needed
    gather_idx = tuple(src_of.get(p, ZERO_ROW) for p in range(seq))

    # --- merge mask (and optional zero) rows into the single kernel input ---
    extra = [jnp.broadcast_to(mask_vec.reshape(1, 1, E), (B, 1, E))]
    if needs_zero:
        extra.append(jnp.zeros((B, 1, E), jnp.float32))
    src = jnp.concatenate([x.astype(jnp.float32)] + extra, axis=1)   # (B, S_src, E)
    S_src = src.shape[1]

    kernel = _make_unmask_kernel(gather_idx, B, seq, E)

    # Single no-grid invocation: whole input + output (<30 KiB) sit in VMEM at
    # once on v5e/v6e/v7x — no per-step overhead, no pipeline bookkeeping.
    # NOTE(v7x): only once B is large enough to amortize ~0.35 us/step (roughly
    # B >= 64-128 at seq=17, E=128) add a leading grid axis over B with
    # dimension_semantics=("parallel",) so the two TensorCores split the batch;
    # block only on B — keep seq/E whole so stores stay unmasked.
    return pl.pallas_call(
        kernel,
        out_shape=jax.ShapeDtypeStruct((B, seq, E), jnp.float32),
        in_specs=[pl.BlockSpec((B, S_src, E), lambda: (0, 0, 0))],
        out_specs=pl.BlockSpec((B, seq, E), lambda: (0, 0, 0)),
    )(src)


def _reference(x, w, bias, sample_index, mask_index, num_patches,
               fill_value=127.0 / 255.0):
    """Deterministic reference mirroring the PyTorch forward (last-write-wins).

    Since raw_inputs is a constant fill, Linear(raw)[0, 0, :] ==
    fill * W.sum(0) + bias; computed here in float64 as an exact reference.
    """
    B, _, E = x.shape
    seq = 1 + num_patches
    pe0 = (fill_value * np.asarray(w, np.float64).sum(axis=0)
           + np.asarray(bias, np.float64)).astype(np.float32)        # (E,)

    out = np.zeros((B, seq, E), np.float32)
    xn = np.asarray(x, np.float32)
    for j, p in enumerate([0] + list(sample_index)):                 # in-order writes
        out[:, p, :] = xn[:, j, :]
    for p in mask_index:
        out[:, p, :] = pe0
    return out


if __name__ == "__main__":
    # Module-config-implied small shapes.
    input_size = 16
    patch_size = 4
    in_chans = 3            # only enters via raw_inputs, which is constant-folded
    embed_dim = 128
    num_patches = (input_size // patch_size) ** 2      # 16 -> seq = 17
    batch = 2

    key = jax.random.PRNGKey(0)
    kw, kb, kx1, kx2 = jax.random.split(key, 4)

    # Linear(H*W -> E) parameters.
    w = jax.random.normal(kw, (input_size * input_size, embed_dim), jnp.float32) * 0.02
    bias = jax.random.normal(kb, (embed_dim,), jnp.float32) * 0.02

    # --- config 1: module-like indices, every output row covered (no zero row) ---
    sample_index = [2, 5, 7, 9, 11, 13, 14, 16]
    mask_index = [1, 3, 4, 6, 8, 10, 12, 15]
    x1 = jax.random.normal(kx1, (batch, 1 + len(sample_index), embed_dim), jnp.float32)

    out1 = jax.block_until_ready(
        unmask_embeeding_chan(x1, w, bias, sample_index, mask_index, num_patches))
    ref1 = _reference(x1, w, bias, sample_index, mask_index, num_patches)
    np.testing.assert_allclose(np.asarray(out1), ref1, rtol=1e-5, atol=1e-5)

    # --- config 2: duplicate sample index, mask overriding an x row, and
    #     uncovered rows (exercises last-write-wins and the zero-row path) ---
    sample_index2 = [2, 2, 5, 7]
    mask_index2 = [1, 3, 5]
    x2 = jax.random.normal(kx2, (batch, 1 + len(sample_index2), embed_dim), jnp.float32)

    out2 = jax.block_until_ready(
        unmask_embeeding_chan(x2, w, bias, sample_index2, mask_index2, num_patches))
    ref2 = _reference(x2, w, bias, sample_index2, mask_index2, num_patches)
    np.testing.assert_allclose(np.asarray(out2), ref2, rtol=1e-5, atol=1e-5)

    print("KERNEL_OK")
</pallas_src>

<mosaic_0001>
module attributes {stable_mosaic.version = 11 : i64} {
  func.func @kernel(%arg0: memref<2x10x128xf32, #tpu.memory_space<vmem>>, %arg1: memref<2x17x128xf32, #tpu.memory_space<vmem>>) attributes {dimension_semantics = [], scalar_prefetch = 0 : i64, scratch_operands = 0 : i64, tpu.core_type = #tpu.core_type<tc>} {
    %c0 = arith.constant 0 : index
    %c0_0 = arith.constant 0 : index
    %c0_1 = arith.constant 0 : index
    %0 = vector.load %arg0[%c0, %c0_0, %c0_1] : memref<2x10x128xf32, #tpu.memory_space<vmem>>, vector<2x10x128xf32>
    %1 = tpu.iota {dimensions = array<i32: 1>} : vector<2x17x128xi32>
    %2 = vector.extract_strided_slice %0 {offsets = [0, 0, 0], sizes = [2, 1, 128], strides = [1, 1, 1]} : vector<2x10x128xf32> to vector<2x1x128xf32>
    %3 = vector.shape_cast %2 : vector<2x1x128xf32> to vector<2x1x128xf32>
    %4 = vector.broadcast %3 : vector<2x1x128xf32> to vector<2x17x128xf32>
    %c1_i32 = arith.constant 1 : i32
    %5 = vector.broadcast %c1_i32 : i32 to vector<2x17x128xi32>
    %6 = arith.cmpi eq, %1, %5 : vector<2x17x128xi32>
    %7 = vector.extract_strided_slice %0 {offsets = [0, 9, 0], sizes = [2, 1, 128], strides = [1, 1, 1]} : vector<2x10x128xf32> to vector<2x1x128xf32>
    %8 = vector.shape_cast %7 : vector<2x1x128xf32> to vector<2x1x128xf32>
    %9 = vector.broadcast %8 : vector<2x1x128xf32> to vector<2x17x128xf32>
    %10 = arith.select %6, %9, %4 : vector<2x17x128xi1>, vector<2x17x128xf32>
    %c2_i32 = arith.constant 2 : i32
    %11 = vector.broadcast %c2_i32 : i32 to vector<2x17x128xi32>
    %12 = arith.cmpi eq, %1, %11 : vector<2x17x128xi32>
    %13 = vector.extract_strided_slice %0 {offsets = [0, 1, 0], sizes = [2, 1, 128], strides = [1, 1, 1]} : vector<2x10x128xf32> to vector<2x1x128xf32>
    %14 = vector.shape_cast %13 : vector<2x1x128xf32> to vector<2x1x128xf32>
    %15 = vector.broadcast %14 : vector<2x1x128xf32> to vector<2x17x128xf32>
    %16 = arith.select %12, %15, %10 : vector<2x17x128xi1>, vector<2x17x128xf32>
    %c3_i32 = arith.constant 3 : i32
    %17 = vector.broadcast %c3_i32 : i32 to vector<2x17x128xi32>
    %18 = arith.cmpi eq, %1, %17 : vector<2x17x128xi32>
    %19 = vector.extract_strided_slice %0 {offsets = [0, 9, 0], sizes = [2, 1, 128], strides = [1, 1, 1]} : vector<2x10x128xf32> to vector<2x1x128xf32>
    %20 = vector.shape_cast %19 : vector<2x1x128xf32> to vector<2x1x128xf32>
    %21 = vector.broadcast %20 : vector<2x1x128xf32> to vector<2x17x128xf32>
    %22 = arith.select %18, %21, %16 : vector<2x17x128xi1>, vector<2x17x128xf32>
    %c4_i32 = arith.constant 4 : i32
    %23 = vector.broadcast %c4_i32 : i32 to vector<2x17x128xi32>
    %24 = arith.cmpi eq, %1, %23 : vector<2x17x128xi32>
    %25 = vector.extract_strided_slice %0 {offsets = [0, 9, 0], sizes = [2, 1, 128], strides = [1, 1, 1]} : vector<2x10x128xf32> to vector<2x1x128xf32>
    %26 = vector.shape_cast %25 : vector<2x1x128xf32> to vector<2x1x128xf32>
    %27 = vector.broadcast %26 : vector<2x1x128xf32> to vector<2x17x128xf32>
    %28 = arith.select %24, %27, %22 : vector<2x17x128xi1>, vector<2x17x128xf32>
    %c5_i32 = arith.constant 5 : i32
    %29 = vector.broadcast %c5_i32 : i32 to vector<2x17x128xi32>
    %30 = arith.cmpi eq, %1, %29 : vector<2x17x128xi32>
    %31 = vector.extract_strided_slice %0 {offsets = [0, 2, 0], sizes = [2, 1, 128], strides = [1, 1, 1]} : vector<2x10x128xf32> to vector<2x1x128xf32>
    %32 = vector.shape_cast %31 : vector<2x1x128xf32> to vector<2x1x128xf32>
    %33 = vector.broadcast %32 : vector<2x1x128xf32> to vector<2x17x128xf32>
    %34 = arith.select %30, %33, %28 : vector<2x17x128xi1>, vector<2x17x128xf32>
    %c6_i32 = arith.constant 6 : i32
    %35 = vector.broadcast %c6_i32 : i32 to vector<2x17x128xi32>
    %36 = arith.cmpi eq, %1, %35 : vector<2x17x128xi32>
    %37 = vector.extract_strided_slice %0 {offsets = [0, 9, 0], sizes = [2, 1, 128], strides = [1, 1, 1]} : vector<2x10x128xf32> to vector<2x1x128xf32>
    %38 = vector.shape_cast %37 : vector<2x1x128xf32> to vector<2x1x128xf32>
    %39 = vector.broadcast %38 : vector<2x1x128xf32> to vector<2x17x128xf32>
    %40 = arith.select %36, %39, %34 : vector<2x17x128xi1>, vector<2x17x128xf32>
    %c7_i32 = arith.constant 7 : i32
    %41 = vector.broadcast %c7_i32 : i32 to vector<2x17x128xi32>
    %42 = arith.cmpi eq, %1, %41 : vector<2x17x128xi32>
    %43 = vector.extract_strided_slice %0 {offsets = [0, 3, 0], sizes = [2, 1, 128], strides = [1, 1, 1]} : vector<2x10x128xf32> to vector<2x1x128xf32>
    %44 = vector.shape_cast %43 : vector<2x1x128xf32> to vector<2x1x128xf32>
    %45 = vector.broadcast %44 : vector<2x1x128xf32> to vector<2x17x128xf32>
    %46 = arith.select %42, %45, %40 : vector<2x17x128xi1>, vector<2x17x128xf32>
    %c8_i32 = arith.constant 8 : i32
    %47 = vector.broadcast %c8_i32 : i32 to vector<2x17x128xi32>
    %48 = arith.cmpi eq, %1, %47 : vector<2x17x128xi32>
    %49 = vector.extract_strided_slice %0 {offsets = [0, 9, 0], sizes = [2, 1, 128], strides = [1, 1, 1]} : vector<2x10x128xf32> to vector<2x1x128xf32>
    %50 = vector.shape_cast %49 : vector<2x1x128xf32> to vector<2x1x128xf32>
    %51 = vector.broadcast %50 : vector<2x1x128xf32> to vector<2x17x128xf32>
    %52 = arith.select %48, %51, %46 : vector<2x17x128xi1>, vector<2x17x128xf32>
    %c9_i32 = arith.constant 9 : i32
    %53 = vector.broadcast %c9_i32 : i32 to vector<2x17x128xi32>
    %54 = arith.cmpi eq, %1, %53 : vector<2x17x128xi32>
    %55 = vector.extract_strided_slice %0 {offsets = [0, 4, 0], sizes = [2, 1, 128], strides = [1, 1, 1]} : vector<2x10x128xf32> to vector<2x1x128xf32>
    %56 = vector.shape_cast %55 : vector<2x1x128xf32> to vector<2x1x128xf32>
    %57 = vector.broadcast %56 : vector<2x1x128xf32> to vector<2x17x128xf32>
    %58 = arith.select %54, %57, %52 : vector<2x17x128xi1>, vector<2x17x128xf32>
    %c10_i32 = arith.constant 10 : i32
    %59 = vector.broadcast %c10_i32 : i32 to vector<2x17x128xi32>
    %60 = arith.cmpi eq, %1, %59 : vector<2x17x128xi32>
    %61 = vector.extract_strided_slice %0 {offsets = [0, 9, 0], sizes = [2, 1, 128], strides = [1, 1, 1]} : vector<2x10x128xf32> to vector<2x1x128xf32>
    %62 = vector.shape_cast %61 : vector<2x1x128xf32> to vector<2x1x128xf32>
    %63 = vector.broadcast %62 : vector<2x1x128xf32> to vector<2x17x128xf32>
    %64 = arith.select %60, %63, %58 : vector<2x17x128xi1>, vector<2x17x128xf32>
    %c11_i32 = arith.constant 11 : i32
    %65 = vector.broadcast %c11_i32 : i32 to vector<2x17x128xi32>
    %66 = arith.cmpi eq, %1, %65 : vector<2x17x128xi32>
    %67 = vector.extract_strided_slice %0 {offsets = [0, 5, 0], sizes = [2, 1, 128], strides = [1, 1, 1]} : vector<2x10x128xf32> to vector<2x1x128xf32>
    %68 = vector.shape_cast %67 : vector<2x1x128xf32> to vector<2x1x128xf32>
    %69 = vector.broadcast %68 : vector<2x1x128xf32> to vector<2x17x128xf32>
    %70 = arith.select %66, %69, %64 : vector<2x17x128xi1>, vector<2x17x128xf32>
    %c12_i32 = arith.constant 12 : i32
    %71 = vector.broadcast %c12_i32 : i32 to vector<2x17x128xi32>
    %72 = arith.cmpi eq, %1, %71 : vector<2x17x128xi32>
    %73 = vector.extract_strided_slice %0 {offsets = [0, 9, 0], sizes = [2, 1, 128], strides = [1, 1, 1]} : vector<2x10x128xf32> to vector<2x1x128xf32>
    %74 = vector.shape_cast %73 : vector<2x1x128xf32> to vector<2x1x128xf32>
    %75 = vector.broadcast %74 : vector<2x1x128xf32> to vector<2x17x128xf32>
    %76 = arith.select %72, %75, %70 : vector<2x17x128xi1>, vector<2x17x128xf32>
    %c13_i32 = arith.constant 13 : i32
    %77 = vector.broadcast %c13_i32 : i32 to vector<2x17x128xi32>
    %78 = arith.cmpi eq, %1, %77 : vector<2x17x128xi32>
    %79 = vector.extract_strided_slice %0 {offsets = [0, 6, 0], sizes = [2, 1, 128], strides = [1, 1, 1]} : vector<2x10x128xf32> to vector<2x1x128xf32>
    %80 = vector.shape_cast %79 : vector<2x1x128xf32> to vector<2x1x128xf32>
    %81 = vector.broadcast %80 : vector<2x1x128xf32> to vector<2x17x128xf32>
    %82 = arith.select %78, %81, %76 : vector<2x17x128xi1>, vector<2x17x128xf32>
    %c14_i32 = arith.constant 14 : i32
    %83 = vector.broadcast %c14_i32 : i32 to vector<2x17x128xi32>
    %84 = arith.cmpi eq, %1, %83 : vector<2x17x128xi32>
    %85 = vector.extract_strided_slice %0 {offsets = [0, 7, 0], sizes = [2, 1, 128], strides = [1, 1, 1]} : vector<2x10x128xf32> to vector<2x1x128xf32>
    %86 = vector.shape_cast %85 : vector<2x1x128xf32> to vector<2x1x128xf32>
    %87 = vector.broadcast %86 : vector<2x1x128xf32> to vector<2x17x128xf32>
    %88 = arith.select %84, %87, %82 : vector<2x17x128xi1>, vector<2x17x128xf32>
    %c15_i32 = arith.constant 15 : i32
    %89 = vector.broadcast %c15_i32 : i32 to vector<2x17x128xi32>
    %90 = arith.cmpi eq, %1, %89 : vector<2x17x128xi32>
    %91 = vector.extract_strided_slice %0 {offsets = [0, 9, 0], sizes = [2, 1, 128], strides = [1, 1, 1]} : vector<2x10x128xf32> to vector<2x1x128xf32>
    %92 = vector.shape_cast %91 : vector<2x1x128xf32> to vector<2x1x128xf32>
    %93 = vector.broadcast %92 : vector<2x1x128xf32> to vector<2x17x128xf32>
    %94 = arith.select %90, %93, %88 : vector<2x17x128xi1>, vector<2x17x128xf32>
    %c16_i32 = arith.constant 16 : i32
    %95 = vector.broadcast %c16_i32 : i32 to vector<2x17x128xi32>
    %96 = arith.cmpi eq, %1, %95 : vector<2x17x128xi32>
    %97 = vector.extract_strided_slice %0 {offsets = [0, 8, 0], sizes = [2, 1, 128], strides = [1, 1, 1]} : vector<2x10x128xf32> to vector<2x1x128xf32>
    %98 = vector.shape_cast %97 : vector<2x1x128xf32> to vector<2x1x128xf32>
    %99 = vector.broadcast %98 : vector<2x1x128xf32> to vector<2x17x128xf32>
    %100 = arith.select %96, %99, %94 : vector<2x17x128xi1>, vector<2x17x128xf32>
    %c0_2 = arith.constant 0 : index
    %c0_3 = arith.constant 0 : index
    %c0_4 = arith.constant 0 : index
    %101 = vector.load %arg1[%c0_2, %c0_3, %c0_4] : memref<2x17x128xf32, #tpu.memory_space<vmem>>, vector<2x17x128xf32>
    tpu.vector_store %arg1[%c0_2, %c0_3, %c0_4], %100 {strides = array<i32>} : memref<2x17x128xf32, #tpu.memory_space<vmem>>, vector<2x17x128xf32>,
    return
  }
}

</mosaic_0001>

<llo_original>
// kernel: tpu_custom_call.1
$region0: #{tpu_custom_call.1}
  #allocation0 [shape = 'u32[]', space=smem, size = 0x4, offset = 0x4, fixed_abs, tag = 'smem constant byte address 0x4 - core index']
  #allocation1 [shape = 'u32[144,128]{1,0:T(1,128)}', space=vmem, size = 0x12000, scoped, tag = 'internal scratch']
  %s0 = inlined_call_operand.vmem [shape: f32[2,10,128], index: 0, kind: input, shape index: {}]
  %s1 = inlined_call_operand.vmem [shape: f32[2,17,128], index: 1, kind: output, shape index: {}]
  %s2 = sld [smem:[#allocation0]]
  $region14: #{tpu_custom_call.1} parent=0
    _
  %s4 = ssub.s32 1, %s2
  %s5 = scalar_select 0, %s4, %s2
  // Predicated region
  $region2: #{tpu_custom_call.1} parent=0 // pred_check
    _
  $region3: #{tpu_custom_call.1} parent=0 // pred_check_branch
    %7 = sbr.rel (0) target = $region5
  $region4: #{tpu_custom_call.1} parent=0 // pred_region
    _
  $region5: #{tpu_custom_call.1} parent=0 // pred_fallthru
    _
  %v8 = vld [vmem:[%s0] sm:$0xff]
  %v9 = vld [vmem:[%s0 + $0x8] sm:$0x3]
  %v10 = vld [vmem:[%s0 + $0x10] sm:$0xff]
  %v11 = vld [vmem:[%s0 + $0x18] sm:$0x3]
  %v12 = vlaneseq
  %v13 = vshrl.u32 %v12, 7
  %v14 = vadd.s32 %v13, 8
  %v15 = vadd.s32 %v13, 16
  %v16 = vlaneseq
  %v17 = vshrl.u32 %v16, 7
  %v18 = vsub.s32 0, %v17
  %v19 = vrot.slane %v8, %v18
  %v20 = vlaneseq
  %v21 = vshrl.u32 %v20, 7
  %v22 = vsub.s32 0, %v21
  %v23 = vrot.slane %v10, %v22
  %vm24 = vcmp.eq.s32.totalorder %v13, 1
  %vm25 = vcmp.eq.s32.totalorder %v14, 1
  %vm26 = vcmp.eq.s32.totalorder %v15, 1
  %v27 = vlaneseq
  %v28 = vshrl.u32 %v27, 7
  %v29 = vsub.s32 1, %v28
  %v30 = vrot.slane %v9, %v29
  %v31 = vlaneseq
  %v32 = vshrl.u32 %v31, 7
  %v33 = vsub.s32 1, %v32
  %v34 = vrot.slane %v11, %v33
  %v35 = vsel %vm24, %v30, %v19
  %v36 = vsel %vm25, %v30, %v19
  %v37 = vsel %vm26, %v30, %v19
  %v38 = vsel %vm24, %v34, %v23
  %v39 = vsel %vm25, %v34, %v23
  %v40 = vsel %vm26, %v34, %v23
  %vm41 = vcmp.eq.s32.totalorder %v13, 2
  %vm42 = vcmp.eq.s32.totalorder %v14, 2
  %vm43 = vcmp.eq.s32.totalorder %v15, 2
  %v44 = vlaneseq
  %v45 = vshrl.u32 %v44, 7
  %v46 = vsub.s32 1, %v45
  %v47 = vrot.slane %v8, %v46
  %v48 = vlaneseq
  %v49 = vshrl.u32 %v48, 7
  %v50 = vsub.s32 1, %v49
  %v51 = vrot.slane %v10, %v50
  %v52 = vsel %vm41, %v47, %v35
  %v53 = vsel %vm42, %v47, %v36
  %v54 = vsel %vm43, %v47, %v37
  %v55 = vsel %vm41, %v51, %v38
  %v56 = vsel %vm42, %v51, %v39
  %v57 = vsel %vm43, %v51, %v40
  %vm58 = vcmp.eq.s32.totalorder %v13, 3
  %vm59 = vcmp.eq.s32.totalorder %v14, 3
  %vm60 = vcmp.eq.s32.totalorder %v15, 3
  %v61 = vsel %vm58, %v30, %v52
  %v62 = vsel %vm59, %v30, %v53
  %v63 = vsel %vm60, %v30, %v54
  %v64 = vsel %vm58, %v34, %v55
  %v65 = vsel %vm59, %v34, %v56
  %v66 = vsel %vm60, %v34, %v57
  %vm67 = vcmp.eq.s32.totalorder %v13, 4
  %vm68 = vcmp.eq.s32.totalorder %v14, 4
  %vm69 = vcmp.eq.s32.totalorder %v15, 4
  %v70 = vsel %vm67, %v30, %v61
  %v71 = vsel %vm68, %v30, %v62
  %v72 = vsel %vm69, %v30, %v63
  %v73 = vsel %vm67, %v34, %v64
  %v74 = vsel %vm68, %v34, %v65
  %v75 = vsel %vm69, %v34, %v66
  %vm76 = vcmp.eq.s32.totalorder %v13, 5
  %vm77 = vcmp.eq.s32.totalorder %v14, 5
  %vm78 = vcmp.eq.s32.totalorder %v15, 5
  %v79 = vlaneseq
  %v80 = vshrl.u32 %v79, 7
  %v81 = vsub.s32 2, %v80
  %v82 = vrot.slane %v8, %v81
  %v83 = vlaneseq
  %v84 = vshrl.u32 %v83, 7
  %v85 = vsub.s32 2, %v84
  %v86 = vrot.slane %v10, %v85
  %v87 = vsel %vm76, %v82, %v70
  %v88 = vsel %vm77, %v82, %v71
  %v89 = vsel %vm78, %v82, %v72
  %v90 = vsel %vm76, %v86, %v73
  %v91 = vsel %vm77, %v86, %v74
  %v92 = vsel %vm78, %v86, %v75
  %vm93 = vcmp.eq.s32.totalorder %v13, 6
  %vm94 = vcmp.eq.s32.totalorder %v14, 6
  %vm95 = vcmp.eq.s32.totalorder %v15, 6
  %v96 = vsel %vm93, %v30, %v87
  %v97 = vsel %vm94, %v30, %v88
  %v98 = vsel %vm95, %v30, %v89
  %v99 = vsel %vm93, %v34, %v90
  %v100 = vsel %vm94, %v34, %v91
  %v101 = vsel %vm95, %v34, %v92
  %vm102 = vcmp.eq.s32.totalorder %v13, 7
  %vm103 = vcmp.eq.s32.totalorder %v14, 7
  %vm104 = vcmp.eq.s32.totalorder %v15, 7
  %v105 = vlaneseq
  %v106 = vshrl.u32 %v105, 7
  %v107 = vsub.s32 3, %v106
  %v108 = vrot.slane %v8, %v107
  %v109 = vlaneseq
  %v110 = vshrl.u32 %v109, 7
  %v111 = vsub.s32 3, %v110
  %v112 = vrot.slane %v10, %v111
  %v113 = vsel %vm102, %v108, %v96
  %v114 = vsel %vm103, %v108, %v97
  %v115 = vsel %vm104, %v108, %v98
  %v116 = vsel %vm102, %v112, %v99
  %v117 = vsel %vm103, %v112, %v100
  %v118 = vsel %vm104, %v112, %v101
  %vm119 = vcmp.eq.s32.totalorder %v13, 8
  %vm120 = vcmp.eq.s32.totalorder %v14, 8
  %vm121 = vcmp.eq.s32.totalorder %v15, 8
  %v122 = vsel %vm119, %v30, %v113
  %v123 = vsel %vm120, %v30, %v114
  %v124 = vsel %vm121, %v30, %v115
  %v125 = vsel %vm119, %v34, %v116
  %v126 = vsel %vm120, %v34, %v117
  %v127 = vsel %vm121, %v34, %v118
  %vm128 = vcmp.eq.s32.totalorder %v13, 9
  %vm129 = vcmp.eq.s32.totalorder %v14, 9
  %vm130 = vcmp.eq.s32.totalorder %v15, 9
  %v131 = vlaneseq
  %v132 = vshrl.u32 %v131, 7
  %v133 = vsub.s32 4, %v132
  %v134 = vrot.slane %v8, %v133
  %v135 = vlaneseq
  %v136 = vshrl.u32 %v135, 7
  %v137 = vsub.s32 4, %v136
  %v138 = vrot.slane %v10, %v137
  %v139 = vsel %vm128, %v134, %v122
  %v140 = vsel %vm129, %v134, %v123
  %v141 = vsel %vm130, %v134, %v124
  %v142 = vsel %vm128, %v138, %v125
  %v143 = vsel %vm129, %v138, %v126
  %v144 = vsel %vm130, %v138, %v127
  %vm145 = vcmp.eq.s32.totalorder %v13, 10
  %vm146 = vcmp.eq.s32.totalorder %v14, 10
  %vm147 = vcmp.eq.s32.totalorder %v15, 10
  %v148 = vsel %vm145, %v30, %v139
  %v149 = vsel %vm146, %v30, %v140
  %v150 = vsel %vm147, %v30, %v141
  %v151 = vsel %vm145, %v34, %v142
  %v152 = vsel %vm146, %v34, %v143
  %v153 = vsel %vm147, %v34, %v144
  %vm154 = vcmp.eq.s32.totalorder %v13, 11
  %vm155 = vcmp.eq.s32.totalorder %v14, 11
  %vm156 = vcmp.eq.s32.totalorder %v15, 11
  %v157 = vlaneseq
  %v158 = vshrl.u32 %v157, 7
  %v159 = vsub.s32 5, %v158
  %v160 = vrot.slane %v8, %v159
  %v161 = vlaneseq
  %v162 = vshrl.u32 %v161, 7
  %v163 = vsub.s32 5, %v162
  %v164 = vrot.slane %v10, %v163
  %v165 = vsel %vm154, %v160, %v148
  %v166 = vsel %vm155, %v160, %v149
  %v167 = vsel %vm156, %v160, %v150
  %v168 = vsel %vm154, %v164, %v151
  %v169 = vsel %vm155, %v164, %v152
  %v170 = vsel %vm156, %v164, %v153
  %vm171 = vcmp.eq.s32.totalorder %v13, 12
  %vm172 = vcmp.eq.s32.totalorder %v14, 12
  %vm173 = vcmp.eq.s32.totalorder %v15, 12
  %v174 = vsel %vm171, %v30, %v165
  %v175 = vsel %vm172, %v30, %v166
  %v176 = vsel %vm173, %v30, %v167
  %v177 = vsel %vm171, %v34, %v168
  %v178 = vsel %vm172, %v34, %v169
  %v179 = vsel %vm173, %v34, %v170
  %vm180 = vcmp.eq.s32.totalorder %v13, 13
  %vm181 = vcmp.eq.s32.totalorder %v14, 13
  %vm182 = vcmp.eq.s32.totalorder %v15, 13
  %v183 = vlaneseq
  %v184 = vshrl.u32 %v183, 7
  %v185 = vsub.s32 6, %v184
  %v186 = vrot.slane %v8, %v185
  %v187 = vlaneseq
  %v188 = vshrl.u32 %v187, 7
  %v189 = vsub.s32 6, %v188
  %v190 = vrot.slane %v10, %v189
  %v191 = vsel %vm180, %v186, %v174
  %v192 = vsel %vm181, %v186, %v175
  %v193 = vsel %vm182, %v186, %v176
  %v194 = vsel %vm180, %v190, %v177
  %v195 = vsel %vm181, %v190, %v178
  %v196 = vsel %vm182, %v190, %v179
  %vm197 = vcmp.eq.s32.totalorder %v13, 14
  %vm198 = vcmp.eq.s32.totalorder %v14, 14
  %vm199 = vcmp.eq.s32.totalorder %v15, 14
  %v200 = vlaneseq
  %v201 = vshrl.u32 %v200, 7
  %v202 = vsub.s32 7, %v201
  %v203 = vrot.slane %v8, %v202
  %v204 = vlaneseq
  %v205 = vshrl.u32 %v204, 7
  %v206 = vsub.s32 7, %v205
  %v207 = vrot.slane %v10, %v206
  %v208 = vsel %vm197, %v203, %v191
  %v209 = vsel %vm198, %v203, %v192
  %v210 = vsel %vm199, %v203, %v193
  %v211 = vsel %vm197, %v207, %v194
  %v212 = vsel %vm198, %v207, %v195
  %v213 = vsel %vm199, %v207, %v196
  %vm214 = vcmp.eq.s32.totalorder %v13, 15
  %vm215 = vcmp.eq.s32.totalorder %v14, 15
  %vm216 = vcmp.eq.s32.totalorder %v15, 15
  %v217 = vsel %vm214, %v30, %v208
  %v218 = vsel %vm215, %v30, %v209
  %v219 = vsel %vm216, %v30, %v210
  %v220 = vsel %vm214, %v34, %v211
  %v221 = vsel %vm215, %v34, %v212
  %v222 = vsel %vm216, %v34, %v213
  %vm223 = vcmp.eq.s32.totalorder %v13, 16
  %vm224 = vcmp.eq.s32.totalorder %v14, 16
  %vm225 = vcmp.eq.s32.totalorder %v15, 16
  %v226 = vlaneseq
  %v227 = vshrl.u32 %v226, 7
  %v228 = vsub.s32 0, %v227
  %v229 = vrot.slane %v9, %v228
  %v230 = vlaneseq
  %v231 = vshrl.u32 %v230, 7
  %v232 = vsub.s32 0, %v231
  %v233 = vrot.slane %v11, %v232
  %v234 = vsel %vm223, %v229, %v217
  %v235 = vsel %vm224, %v229, %v218
  %v236 = vsel %vm225, %v229, %v219
  %v237 = vsel %vm223, %v233, %v220
  %v238 = vsel %vm224, %v233, %v221
  %v239 = vsel %vm225, %v233, %v222
  %240 = vst [vmem:[%s1] sm:$0xff] %v234
  %241 = vst [vmem:[%s1 + $0x8] sm:$0xff] %v235
  %242 = vst [vmem:[%s1 + $0x10] sm:$0x1] %v236
  %243 = vst [vmem:[%s1 + $0x18] sm:$0xff] %v237
  %244 = vst [vmem:[%s1 + $0x20] sm:$0xff] %v238
  %245 = vst [vmem:[%s1 + $0x28] sm:$0x1] %v239
  // Predicated region
  $region6: #{tpu_custom_call.1} parent=0 // pred_check
    _
  $region7: #{tpu_custom_call.1} parent=0 // pred_check_branch
    %247 = sbr.rel (0) target = $region9
  $region8: #{tpu_custom_call.1} parent=0 // pred_region
    _
  $region9: #{tpu_custom_call.1} parent=0 // pred_fallthru
    _
  // Predicated region
  $region10: #{tpu_custom_call.1} parent=0 // pred_check
    _
  $region11: #{tpu_custom_call.1} parent=0 // pred_check_branch
    %249 = sbr.rel (0) target = $region13
  $region12: #{tpu_custom_call.1} parent=0 // pred_region
    _
  $region13: #{tpu_custom_call.1} parent=0 // pred_fallthru
    _

</llo_original>
